<compile_context>
chip_gen: v6e
topology: v6e:2x2x1
jax: 0.10.0
libtpu: 0.0.40
codegen_flags: <defaults>
</compile_context>

<pallas_src>
import functools

import jax
import jax.numpy as jnp
from jax.experimental import pallas as pl
from jax.experimental.pallas import tpu as pltpu


def _lem_kernel(x_ref, w12_ref, b12_ref, wall_ref, bfin_ref, o_ref, s_ref,
                *, c_mid, m, H, W):
    """Per-image kernel (one grid step == one batch element).

    x_ref   : (c1, H*W)           input image, channels-first, lane-dense
    w12_ref : (c_mid+m, c1)       stacked cv1/cv2 1x1-conv weights (resident)
    b12_ref : (c_mid+m, 1)        stacked cv1/cv2 biases (resident)
    wall_ref: (c2, K_pad)         [Wy | Wz@W3_center | Wz@W3_neighbors..] + zero pad
    bfin_ref: (c2, 1)             folded bias (BN + cv3 bias routed through Wz)
    o_ref   : (c2, H*W)           output image
    s_ref   : (K_pad, H*W) VMEM   stacked [y1 ; 9 im2col taps of y2 ; zero pad]
    """
    HW = H * W
    x = x_ref[...]                                                 # (c1, HW)

    # ---- cv1 & cv2 fused: one MXU pass --------------------------------------
    y12 = jnp.dot(w12_ref[...], x, preferred_element_type=jnp.float32)
    y12 = y12 + b12_ref[...]                                       # (c_mid+m, HW)
    # Rows [0:c_mid] of the stacked operand are y1 = cv1(x); rows
    # [c_mid:c_mid+m] are y2 = cv2(x), which is also the (always valid,
    # unmasked) center tap of the 3x3 im2col block -> one aligned store.
    s_ref[0:c_mid + m, :] = y12
    y2 = y12[c_mid:, :]                                            # (m, HW)

    # ---- hoisted border masks (4 compares total) -----------------------------
    p = jax.lax.broadcasted_iota(jnp.int32, (1, HW), 1)
    if (W & (W - 1)) == 0:                                         # power of two
        ww = p & (W - 1)
        hh = p >> (W.bit_length() - 1)
    else:
        ww = p % W
        hh = p // W
    mask_h = {-1: hh > 0, 0: None, 1: hh < H - 1}
    mask_w = {-1: ww > 0, 0: None, 1: ww < W - 1}

    # ---- remaining 8 taps of the 3x3 conv (pad=1) -----------------------------
    # Lane rotation wraps around this image's H*W axis; padding==1 equals the
    # maximum shift, so every wrapped lane is zeroed by the border mask.
    t = 1
    for dh in (-1, 0, 1):
        for dw in (-1, 0, 1):
            if dh == 0 and dw == 0:
                continue                                           # center already stored
            s = dh * W + dw
            shifted = pltpu.roll(y2, (-s) % HW, axis=1)            # XLU lane rotate
            mh, mw = mask_h[dh], mask_w[dw]
            mask = mh if mw is None else (mw if mh is None else mh & mw)
            row = c_mid + t * m
            s_ref[row:row + m, :] = jnp.where(mask, shifted, 0.0)
            t += 1

    # ---- zero the sublane-alignment pad rows ---------------------------------
    # (their Wall columns are zero, but uninitialized VMEM could hold NaN/Inf)
    k_used = c_mid + 9 * m
    k_pad = s_ref.shape[0]
    if k_pad > k_used:
        s_ref[k_used:k_pad, :] = jnp.zeros((k_pad - k_used, HW), jnp.float32)

    # ---- single fused epilogue matmul + folded BN bias + SiLU -----------------
    pre = jnp.dot(wall_ref[...], s_ref[...], preferred_element_type=jnp.float32)
    pre = pre + bfin_ref[...]                                      # (c2, HW)
    o_ref[...] = (pre * jax.nn.sigmoid(pre)).astype(o_ref.dtype)


def lem_forward(x_nchw, params, *, eps=1e-5, use_bf16=False):
    """x_nchw: (B, c1, H, W) float32; params in PyTorch layouts. Returns (B, c2, H, W)."""
    (w1, b1, w2, b2, w3, b3, wc, gamma, beta, rmean, rvar) = params
    B, c1, H, W = x_nchw.shape
    c_mid = w1.shape[0]                  # int(c2 * expansion)
    m = w2.shape[0]                      # int(c2 / 32)
    c2 = wc.shape[0]
    HW = H * W
    # The concat layout fold below requires the LEM channel identity.
    assert c2 == 16 * m + c_mid, "LEM requires c2 == 16*(c2//32) + int(c2*expansion)"

    # ---- fold / pack parameters at trace time --------------------------------
    # bf16 only on MXU operands (x, W12); all VPU/EUP math stays f32 (v5e-safe).
    in_dtype = jnp.bfloat16 if use_bf16 else jnp.float32
    W12 = jnp.concatenate([w1.reshape(c_mid, c1), w2.reshape(m, c1)],
                          axis=0).astype(in_dtype)                 # (c_mid+m, c1)
    b12 = jnp.concatenate([b1, b2], axis=0)[:, None].astype(jnp.float32)

    # Final 1x1 conv with eval-mode BN folded in.
    Wc = wc.reshape(c2, c2)
    scale = gamma / jnp.sqrt(rvar + eps)
    Wc_s = Wc * scale[:, None]
    # Concat channel layout: [16 copies of z (m ch each)] then [cv1(x) (c_mid ch)].
    Wz = Wc_s[:, :16 * m].reshape(c2, 16, m).sum(axis=1)           # (c2, m)
    Wy = Wc_s[:, 16 * m:]                                          # (c2, c_mid)

    # Fold cv3 (3x3) into the z-portion of the final conv:
    #   Wz @ (sum_t W3_t @ patch_t + b3) = sum_t (Wz @ W3_t) @ patch_t + Wz @ b3
    taps = [Wz @ w3[:, :, 1, 1]]                                   # center tap first
    for dh in (-1, 0, 1):
        for dw in (-1, 0, 1):
            if dh == 0 and dw == 0:
                continue
            taps.append(Wz @ w3[:, :, dh + 1, dw + 1])             # (c2, m) each
    Wall = jnp.concatenate([Wy] + taps, axis=1)                    # (c2, c_mid+9m)
    k_used = c_mid + 9 * m
    k_pad = ((k_used + 7) // 8) * 8                                # 8-aligned K for MXU
    if k_pad > k_used:
        Wall = jnp.pad(Wall, ((0, 0), (0, k_pad - k_used)))
    Wall = Wall.astype(jnp.float32)
    b_final = ((beta - rmean * scale) + Wz @ b3)[:, None].astype(jnp.float32)

    # ---- lane-dense per-image layout, no HBM transposes -----------------------
    x_k = x_nchw.reshape(B, c1, HW).astype(in_dtype)               # contiguous reshape

    kernel = functools.partial(_lem_kernel, c_mid=c_mid, m=m, H=H, W=W)

    def resident(shape):                                           # weight stays in VMEM
        return pl.BlockSpec(shape, lambda b: (0,) * len(shape))

    out = pl.pallas_call(
        kernel,
        out_shape=jax.ShapeDtypeStruct((B, c2, HW), jnp.float32),
        grid=(B,),
        in_specs=[
            # None == squeezed batch dim: kernel sees a lane-dense (c1, H*W) tile.
            pl.BlockSpec((None, c1, HW), lambda b: (b, 0, 0)),
            resident(W12.shape),
            resident(b12.shape),
            resident(Wall.shape),
            resident(b_final.shape),
        ],
        out_specs=pl.BlockSpec((None, c2, HW), lambda b: (b, 0, 0)),
        scratch_shapes=[pltpu.VMEM((k_pad, HW), jnp.float32)],
        compiler_params=pltpu.CompilerParams(
            dimension_semantics=("parallel",),          # megacore on v7x
            vmem_limit_bytes=48 * 1024 * 1024,          # < v7x 64 MiB physical
        ),
    )(x_k, W12, b12, Wall, b_final)

    return out.reshape(B, c2, H, W)


def _reference(x, params, *, eps=1e-5):
    """Pure-JAX reference faithful to the PyTorch forward (no folding)."""
    (w1, b1, w2, b2, w3, b3, wc, gamma, beta, rmean, rvar) = params
    B, c1, H, W = x.shape
    c2 = wc.shape[0]

    xl = jnp.transpose(x, (0, 2, 3, 1))                            # (B, H, W, c1)

    def conv1x1(t, w, b=None):
        y = jnp.einsum('bhwc,oc->bhwo', t, w.reshape(w.shape[0], w.shape[1]))
        return y if b is None else y + b

    # cv2 then cv3 (3x3, pad=1)
    y2 = conv1x1(xl, w2, b2)                                       # (B, H, W, m)
    y2p = jnp.pad(y2, ((0, 0), (1, 1), (1, 1), (0, 0)))
    z = jnp.zeros_like(y2)
    for kh in range(3):
        for kw in range(3):
            z = z + jnp.einsum('bhwc,oc->bhwo',
                               y2p[:, kh:kh + H, kw:kw + W, :], w3[:, :, kh, kw])
    z = z + b3

    y1 = conv1x1(xl, w1, b1)                                       # (B, H, W, c_mid)
    cat = jnp.concatenate([z] * 16 + [y1], axis=-1)                # (B, H, W, c2)
    y = jnp.einsum('bhwc,oc->bhwo', cat, wc.reshape(c2, c2))
    scale = gamma / jnp.sqrt(rvar + eps)
    y = y * scale + (beta - rmean * scale)
    out = y * jax.nn.sigmoid(y)
    return jnp.transpose(out, (0, 3, 1, 2))


if __name__ == "__main__":
    # LEM(c1=64, c2=64, expansion=0.5): c_ = 32, c2/32 = 2, 16*2 + 32 = 64 = c2.
    B, c1, H, W = 2, 64, 16, 16
    c2 = 64
    c_mid = int(c2 * 0.5)
    m = c2 // 32

    key = jax.random.PRNGKey(0)
    ks = jax.random.split(key, 12)

    x = jax.random.normal(ks[0], (B, c1, H, W), dtype=jnp.float32)

    w1 = 0.2 * jax.random.normal(ks[1], (c_mid, c1, 1, 1), dtype=jnp.float32)
    b1 = 0.1 * jax.random.normal(ks[2], (c_mid,), dtype=jnp.float32)
    w2 = 0.2 * jax.random.normal(ks[3], (m, c1, 1, 1), dtype=jnp.float32)
    b2 = 0.1 * jax.random.normal(ks[4], (m,), dtype=jnp.float32)
    w3 = 0.2 * jax.random.normal(ks[5], (m, m, 3, 3), dtype=jnp.float32)
    b3 = 0.1 * jax.random.normal(ks[6], (m,), dtype=jnp.float32)
    wc = 0.2 * jax.random.normal(ks[7], (c2, c2, 1, 1), dtype=jnp.float32)
    gamma = 1.0 + 0.1 * jax.random.normal(ks[8], (c2,), dtype=jnp.float32)
    beta = 0.1 * jax.random.normal(ks[9], (c2,), dtype=jnp.float32)
    rmean = 0.1 * jax.random.normal(ks[10], (c2,), dtype=jnp.float32)
    rvar = 1.0 + 0.1 * jnp.abs(jax.random.normal(ks[11], (c2,), dtype=jnp.float32))

    params = (w1, b1, w2, b2, w3, b3, wc, gamma, beta, rmean, rvar)

    out = jax.block_until_ready(lem_forward(x, params))
    ref = _reference(x, params)

    assert out.shape == (B, c2, H, W)
    # Tolerance absorbs rounding differences between the folded kernel weights
    # (BN / 16x-tile / cv3 fold) and the unfolded op-for-op reference.
    assert jnp.allclose(out, ref, atol=5e-3, rtol=5e-3), "mismatch vs JAX reference"

    print("KERNEL_OK")
</pallas_src>

<mosaic_0001>
module attributes {stable_mosaic.version = 11 : i64} {
  func.func @_lem_kernel(%arg0: i32, %arg1: memref<1x64x256xf32, #tpu.memory_space<vmem>>, %arg2: memref<34x64xf32, #tpu.memory_space<vmem>>, %arg3: memref<34x1xf32, #tpu.memory_space<vmem>>, %arg4: memref<64x56xf32, #tpu.memory_space<vmem>>, %arg5: memref<64x1xf32, #tpu.memory_space<vmem>>, %arg6: memref<1x64x256xf32, #tpu.memory_space<vmem>>, %arg7: memref<56x256xf32, #tpu.memory_space<vmem>>) attributes {dimension_semantics = [#tpu.dimension_semantics<parallel>], iteration_bounds = array<i64: 2>, scalar_prefetch = 0 : i64, scratch_operands = 1 : i64, tpu.core_type = #tpu.core_type<tc>, window_params = [{transform_indices = @transform_0, window_bounds = array<i64: 1, 64, 256>}, {pipeline_mode = #tpu.pipeline_mode<synchronous>, transform_indices = @transform_1, window_bounds = array<i64: 34, 64>}, {pipeline_mode = #tpu.pipeline_mode<synchronous>, transform_indices = @transform_2, window_bounds = array<i64: 34, 1>}, {pipeline_mode = #tpu.pipeline_mode<synchronous>, transform_indices = @transform_3, window_bounds = array<i64: 64, 56>}, {pipeline_mode = #tpu.pipeline_mode<synchronous>, transform_indices = @transform_4, window_bounds = array<i64: 64, 1>}, {transform_indices = @transform_5, window_bounds = array<i64: 1, 64, 256>}]} {
    %c0 = arith.constant 0 : index
    %c0_0 = arith.constant 0 : index
    %c0_1 = arith.constant 0 : index
    %0 = vector.load %arg1[%c0, %c0_0, %c0_1] : memref<1x64x256xf32, #tpu.memory_space<vmem>>, vector<1x64x256xf32>
    %1 = vector.shape_cast %0 : vector<1x64x256xf32> to vector<64x256xf32>
    %c0_2 = arith.constant 0 : index
    %c0_3 = arith.constant 0 : index
    %2 = vector.load %arg2[%c0_2, %c0_3] : memref<34x64xf32, #tpu.memory_space<vmem>>, vector<34x64xf32>
    %cst = arith.constant dense<0.000000e+00> : vector<34x256xf32>
    %3 = tpu.matmul %2, %1, %cst {dimension_numbers = #tpu.dot_dimension_numbers<[1], [0], [0], [1], [0, 0, 1, 1], [], []>} : vector<34x64xf32>, vector<64x256xf32>, vector<34x256xf32> -> vector<34x256xf32>
    %c0_4 = arith.constant 0 : index
    %c0_5 = arith.constant 0 : index
    %4 = vector.load %arg3[%c0_4, %c0_5] : memref<34x1xf32, #tpu.memory_space<vmem>>, vector<34x1xf32>
    %5 = vector.broadcast %4 : vector<34x1xf32> to vector<34x256xf32>
    %6 = arith.addf %3, %5 : vector<34x256xf32>
    %c0_6 = arith.constant 0 : index
    %c0_7 = arith.constant 0 : index
    %7 = vector.load %arg7[%c0_6, %c0_7] : memref<56x256xf32, #tpu.memory_space<vmem>>, vector<34x256xf32>
    tpu.vector_store %arg7[%c0_6, %c0_7], %6 {strides = array<i32>} : memref<56x256xf32, #tpu.memory_space<vmem>>, vector<34x256xf32>,
    %8 = vector.extract_strided_slice %6 {offsets = [32, 0], sizes = [2, 256], strides = [1, 1]} : vector<34x256xf32> to vector<2x256xf32>
    %9 = tpu.iota {dimensions = array<i32: 1>} : vector<1x256xi32>
    %c15_i32 = arith.constant 15 : i32
    %10 = vector.broadcast %c15_i32 : i32 to vector<1x256xi32>
    %11 = arith.andi %9, %10 : vector<1x256xi32>
    %c4_i32 = arith.constant 4 : i32
    %12 = vector.broadcast %c4_i32 : i32 to vector<1x256xi32>
    %13 = arith.shrsi %9, %12 : vector<1x256xi32>
    %c0_i32 = arith.constant 0 : i32
    %14 = vector.broadcast %c0_i32 : i32 to vector<1x256xi32>
    %15 = arith.cmpi sgt, %13, %14 : vector<1x256xi32>
    %c15_i32_8 = arith.constant 15 : i32
    %16 = vector.broadcast %c15_i32_8 : i32 to vector<1x256xi32>
    %17 = arith.cmpi slt, %13, %16 : vector<1x256xi32>
    %c0_i32_9 = arith.constant 0 : i32
    %18 = vector.broadcast %c0_i32_9 : i32 to vector<1x256xi32>
    %19 = arith.cmpi sgt, %11, %18 : vector<1x256xi32>
    %c15_i32_10 = arith.constant 15 : i32
    %20 = vector.broadcast %c15_i32_10 : i32 to vector<1x256xi32>
    %21 = arith.cmpi slt, %11, %20 : vector<1x256xi32>
    %c17_i32 = arith.constant 17 : i32
    %22 = tpu.dynamic_rotate %8 by %c17_i32 dim 1 : vector<2x256xf32>, i32 -> vector<2x256xf32>
    %23 = arith.andi %15, %19 : vector<1x256xi1>
    %cst_11 = arith.constant 0.000000e+00 : f32
    %24 = vector.shape_cast %23 : vector<1x256xi1> to vector<1x256xi1>
    %25 = vector.broadcast %24 : vector<1x256xi1> to vector<2x256xi1>
    %26 = vector.broadcast %cst_11 : f32 to vector<2x256xf32>
    %27 = arith.select %25, %22, %26 : vector<2x256xi1>, vector<2x256xf32>
    %c34 = arith.constant 34 : index
    %c0_12 = arith.constant 0 : index
    %28 = vector.load %arg7[%c34, %c0_12] : memref<56x256xf32, #tpu.memory_space<vmem>>, vector<2x256xf32>
    tpu.vector_store %arg7[%c34, %c0_12], %27 {strides = array<i32>} : memref<56x256xf32, #tpu.memory_space<vmem>>, vector<2x256xf32>,
    %c16_i32 = arith.constant 16 : i32
    %29 = tpu.dynamic_rotate %8 by %c16_i32 dim 1 : vector<2x256xf32>, i32 -> vector<2x256xf32>
    %cst_13 = arith.constant 0.000000e+00 : f32
    %30 = vector.shape_cast %15 : vector<1x256xi1> to vector<1x256xi1>
    %31 = vector.broadcast %30 : vector<1x256xi1> to vector<2x256xi1>
    %32 = vector.broadcast %cst_13 : f32 to vector<2x256xf32>
    %33 = arith.select %31, %29, %32 : vector<2x256xi1>, vector<2x256xf32>
    %c36 = arith.constant 36 : index
    %c0_14 = arith.constant 0 : index
    %34 = vector.load %arg7[%c36, %c0_14] : memref<56x256xf32, #tpu.memory_space<vmem>>, vector<2x256xf32>
    tpu.vector_store %arg7[%c36, %c0_14], %33 {strides = array<i32>} : memref<56x256xf32, #tpu.memory_space<vmem>>, vector<2x256xf32>,
    %c15_i32_15 = arith.constant 15 : i32
    %35 = tpu.dynamic_rotate %8 by %c15_i32_15 dim 1 : vector<2x256xf32>, i32 -> vector<2x256xf32>
    %36 = arith.andi %15, %21 : vector<1x256xi1>
    %cst_16 = arith.constant 0.000000e+00 : f32
    %37 = vector.shape_cast %36 : vector<1x256xi1> to vector<1x256xi1>
    %38 = vector.broadcast %37 : vector<1x256xi1> to vector<2x256xi1>
    %39 = vector.broadcast %cst_16 : f32 to vector<2x256xf32>
    %40 = arith.select %38, %35, %39 : vector<2x256xi1>, vector<2x256xf32>
    %c38 = arith.constant 38 : index
    %c0_17 = arith.constant 0 : index
    %41 = vector.load %arg7[%c38, %c0_17] : memref<56x256xf32, #tpu.memory_space<vmem>>, vector<2x256xf32>
    tpu.vector_store %arg7[%c38, %c0_17], %40 {strides = array<i32>} : memref<56x256xf32, #tpu.memory_space<vmem>>, vector<2x256xf32>,
    %c1_i32 = arith.constant 1 : i32
    %42 = tpu.dynamic_rotate %8 by %c1_i32 dim 1 : vector<2x256xf32>, i32 -> vector<2x256xf32>
    %cst_18 = arith.constant 0.000000e+00 : f32
    %43 = vector.shape_cast %19 : vector<1x256xi1> to vector<1x256xi1>
    %44 = vector.broadcast %43 : vector<1x256xi1> to vector<2x256xi1>
    %45 = vector.broadcast %cst_18 : f32 to vector<2x256xf32>
    %46 = arith.select %44, %42, %45 : vector<2x256xi1>, vector<2x256xf32>
    %c40 = arith.constant 40 : index
    %c0_19 = arith.constant 0 : index
    %47 = vector.load %arg7[%c40, %c0_19] : memref<56x256xf32, #tpu.memory_space<vmem>>, vector<2x256xf32>
    tpu.vector_store %arg7[%c40, %c0_19], %46 {strides = array<i32>} : memref<56x256xf32, #tpu.memory_space<vmem>>, vector<2x256xf32>,
    %c255_i32 = arith.constant 255 : i32
    %48 = tpu.dynamic_rotate %8 by %c255_i32 dim 1 : vector<2x256xf32>, i32 -> vector<2x256xf32>
    %cst_20 = arith.constant 0.000000e+00 : f32
    %49 = vector.shape_cast %21 : vector<1x256xi1> to vector<1x256xi1>
    %50 = vector.broadcast %49 : vector<1x256xi1> to vector<2x256xi1>
    %51 = vector.broadcast %cst_20 : f32 to vector<2x256xf32>
    %52 = arith.select %50, %48, %51 : vector<2x256xi1>, vector<2x256xf32>
    %c42 = arith.constant 42 : index
    %c0_21 = arith.constant 0 : index
    %53 = vector.load %arg7[%c42, %c0_21] : memref<56x256xf32, #tpu.memory_space<vmem>>, vector<2x256xf32>
    tpu.vector_store %arg7[%c42, %c0_21], %52 {strides = array<i32>} : memref<56x256xf32, #tpu.memory_space<vmem>>, vector<2x256xf32>,
    %c241_i32 = arith.constant 241 : i32
    %54 = tpu.dynamic_rotate %8 by %c241_i32 dim 1 : vector<2x256xf32>, i32 -> vector<2x256xf32>
    %55 = arith.andi %17, %19 : vector<1x256xi1>
    %cst_22 = arith.constant 0.000000e+00 : f32
    %56 = vector.shape_cast %55 : vector<1x256xi1> to vector<1x256xi1>
    %57 = vector.broadcast %56 : vector<1x256xi1> to vector<2x256xi1>
    %58 = vector.broadcast %cst_22 : f32 to vector<2x256xf32>
    %59 = arith.select %57, %54, %58 : vector<2x256xi1>, vector<2x256xf32>
    %c44 = arith.constant 44 : index
    %c0_23 = arith.constant 0 : index
    %60 = vector.load %arg7[%c44, %c0_23] : memref<56x256xf32, #tpu.memory_space<vmem>>, vector<2x256xf32>
    tpu.vector_store %arg7[%c44, %c0_23], %59 {strides = array<i32>} : memref<56x256xf32, #tpu.memory_space<vmem>>, vector<2x256xf32>,
    %c240_i32 = arith.constant 240 : i32
    %61 = tpu.dynamic_rotate %8 by %c240_i32 dim 1 : vector<2x256xf32>, i32 -> vector<2x256xf32>
    %cst_24 = arith.constant 0.000000e+00 : f32
    %62 = vector.shape_cast %17 : vector<1x256xi1> to vector<1x256xi1>
    %63 = vector.broadcast %62 : vector<1x256xi1> to vector<2x256xi1>
    %64 = vector.broadcast %cst_24 : f32 to vector<2x256xf32>
    %65 = arith.select %63, %61, %64 : vector<2x256xi1>, vector<2x256xf32>
    %c46 = arith.constant 46 : index
    %c0_25 = arith.constant 0 : index
    %66 = vector.load %arg7[%c46, %c0_25] : memref<56x256xf32, #tpu.memory_space<vmem>>, vector<2x256xf32>
    tpu.vector_store %arg7[%c46, %c0_25], %65 {strides = array<i32>} : memref<56x256xf32, #tpu.memory_space<vmem>>, vector<2x256xf32>,
    %c239_i32 = arith.constant 239 : i32
    %67 = tpu.dynamic_rotate %8 by %c239_i32 dim 1 : vector<2x256xf32>, i32 -> vector<2x256xf32>
    %68 = arith.andi %17, %21 : vector<1x256xi1>
    %cst_26 = arith.constant 0.000000e+00 : f32
    %69 = vector.shape_cast %68 : vector<1x256xi1> to vector<1x256xi1>
    %70 = vector.broadcast %69 : vector<1x256xi1> to vector<2x256xi1>
    %71 = vector.broadcast %cst_26 : f32 to vector<2x256xf32>
    %72 = arith.select %70, %67, %71 : vector<2x256xi1>, vector<2x256xf32>
    %c48 = arith.constant 48 : index
    %c0_27 = arith.constant 0 : index
    %73 = vector.load %arg7[%c48, %c0_27] : memref<56x256xf32, #tpu.memory_space<vmem>>, vector<2x256xf32>
    tpu.vector_store %arg7[%c48, %c0_27], %72 {strides = array<i32>} : memref<56x256xf32, #tpu.memory_space<vmem>>, vector<2x256xf32>,
    %cst_28 = arith.constant 0.000000e+00 : f32
    %74 = vector.broadcast %cst_28 : f32 to vector<6x256xf32>
    %c50 = arith.constant 50 : index
    %c0_29 = arith.constant 0 : index
    %75 = vector.load %arg7[%c50, %c0_29] : memref<56x256xf32, #tpu.memory_space<vmem>>, vector<6x256xf32>
    tpu.vector_store %arg7[%c50, %c0_29], %74 {strides = array<i32>} : memref<56x256xf32, #tpu.memory_space<vmem>>, vector<6x256xf32>,
    %c0_30 = arith.constant 0 : index
    %c0_31 = arith.constant 0 : index
    %76 = vector.load %arg4[%c0_30, %c0_31] : memref<64x56xf32, #tpu.memory_space<vmem>>, vector<64x56xf32>
    %c0_32 = arith.constant 0 : index
    %c0_33 = arith.constant 0 : index
    %77 = vector.load %arg7[%c0_32, %c0_33] : memref<56x256xf32, #tpu.memory_space<vmem>>, vector<56x256xf32>
    %cst_34 = arith.constant dense<0.000000e+00> : vector<64x256xf32>
    %78 = tpu.matmul %76, %77, %cst_34 {dimension_numbers = #tpu.dot_dimension_numbers<[1], [0], [0], [1], [0, 0, 1, 1], [], []>} : vector<64x56xf32>, vector<56x256xf32>, vector<64x256xf32> -> vector<64x256xf32>
    %c0_35 = arith.constant 0 : index
    %c0_36 = arith.constant 0 : index
    %79 = vector.load %arg5[%c0_35, %c0_36] : memref<64x1xf32, #tpu.memory_space<vmem>>, vector<64x1xf32>
    %80 = vector.broadcast %79 : vector<64x1xf32> to vector<64x256xf32>
    %81 = arith.addf %78, %80 : vector<64x256xf32>
    %82 = arith.negf %81 : vector<64x256xf32>
    %83 = math.exp %82 : vector<64x256xf32>
    %cst_37 = arith.constant 1.000000e+00 : f32
    %84 = vector.broadcast %cst_37 : f32 to vector<64x256xf32>
    %85 = arith.addf %84, %83 : vector<64x256xf32>
    %86 = arith.divf %84, %85 : vector<64x256xf32>
    %87 = arith.mulf %81, %86 : vector<64x256xf32>
    %c0_38 = arith.constant 0 : index
    %c0_39 = arith.constant 0 : index
    %c0_40 = arith.constant 0 : index
    %88 = vector.load %arg6[%c0_38, %c0_39, %c0_40] : memref<1x64x256xf32, #tpu.memory_space<vmem>>, vector<1x64x256xf32>
    %89 = vector.shape_cast %88 : vector<1x64x256xf32> to vector<64x256xf32>
    %90 = vector.shape_cast %87 : vector<64x256xf32> to vector<1x64x256xf32>
    tpu.vector_store %arg6[%c0_38, %c0_39, %c0_40], %90 {strides = array<i32>} : memref<1x64x256xf32, #tpu.memory_space<vmem>>, vector<1x64x256xf32>,
    return
  }
  func.func @transform_0(%arg0: i32) -> (i32, i32, i32) {
    %c0_i32 = arith.constant 0 : i32
    %c0_i32_0 = arith.constant 0 : i32
    %c0_i32_1 = arith.constant 0 : i32
    return %arg0, %c0_i32, %c0_i32_0 : i32, i32, i32
  }
  func.func @transform_1(%arg0: i32) -> (i32, i32) {
    %c0_i32 = arith.constant 0 : i32
    %c0_i32_0 = arith.constant 0 : i32
    %c0_i32_1 = arith.constant 0 : i32
    return %c0_i32, %c0_i32_0 : i32, i32
  }
  func.func @transform_2(%arg0: i32) -> (i32, i32) {
    %c0_i32 = arith.constant 0 : i32
    %c0_i32_0 = arith.constant 0 : i32
    %c0_i32_1 = arith.constant 0 : i32
    return %c0_i32, %c0_i32_0 : i32, i32
  }
  func.func @transform_3(%arg0: i32) -> (i32, i32) {
    %c0_i32 = arith.constant 0 : i32
    %c0_i32_0 = arith.constant 0 : i32
    %c0_i32_1 = arith.constant 0 : i32
    return %c0_i32, %c0_i32_0 : i32, i32
  }
  func.func @transform_4(%arg0: i32) -> (i32, i32) {
    %c0_i32 = arith.constant 0 : i32
    %c0_i32_0 = arith.constant 0 : i32
    %c0_i32_1 = arith.constant 0 : i32
    return %c0_i32, %c0_i32_0 : i32, i32
  }
  func.func @transform_5(%arg0: i32) -> (i32, i32, i32) {
    %c0_i32 = arith.constant 0 : i32
    %c0_i32_0 = arith.constant 0 : i32
    %c0_i32_1 = arith.constant 0 : i32
    return %arg0, %c0_i32, %c0_i32_0 : i32, i32, i32
  }
}

</mosaic_0001>

<llo_original>
// kernel: tpu_custom_call.1
$region0: #{tpu_custom_call.1}
  #allocation0 [shape = 'u32[]', space=smem, size = 0x4, offset = 0x4, fixed_abs, tag = 'smem constant byte address 0x4 - core index']
  #allocation1 [shape = 'u32[144,128]{1,0:T(1,128)}', space=vmem, size = 0x12000, scoped, tag = 'internal scratch']
  #allocation2 [shape = 'f32[56,256]{1,0:T(8,128)}', space=vmem, size = 0xe000, scoped, tag = 'scratch operand']
  %s0 = inlined_call_operand.hbm [shape: f32[2,64,256], index: 0, kind: input, shape index: {}]
  %s1 = inlined_call_operand.vmem [shape: f32[34,64], index: 1, kind: input, shape index: {}]
  %s2 = inlined_call_operand.vmem [shape: f32[34,1], index: 2, kind: input, shape index: {}]
  %s3 = inlined_call_operand.vmem [shape: f32[64,56], index: 3, kind: input, shape index: {}]
  %s4 = inlined_call_operand.vmem [shape: f32[64,1], index: 4, kind: input, shape index: {}]
  %s5 = inlined_call_operand.hbm [shape: f32[2,64,256], index: 5, kind: output, shape index: {}]
  %s6 = sld [smem:[#allocation0]]
  $region57: #{tpu_custom_call.1} parent=0
    _
  %s8 = ssub.s32 1, %s6
  %s9 = scalar_select 0, %s8, %s6
  $region1: #{tpu_custom_call.1} parent=0
    #allocation3 [shape = 'u8[131072]{0}', space=vmem, size = 0x20000, scoped, tag = 'input window, operand 0']
    #allocation4 [shape = 's32[2]{0}', space=sflag, size = 0x8, scoped, tag = 'scoped memory for tpu_custom_call.1']
    #allocation5 [shape = 's32[2]{0}', space=sflag, size = 0x8, scoped, tag = 'scoped memory for tpu_custom_call.1']
    #allocation6 [shape = 'u8[131072]{0}', space=vmem, size = 0x20000, scoped, tag = 'output window, operand 0']
    %10 = vsyncpa [#allocation4], 0
    %s11 = scalar_lea.sflag [#allocation4], 1
    %12 = vsyncpa %s11, 0
    %13 = vsyncpa [#allocation5], 0
    %s14 = scalar_lea.sflag [#allocation5], 1
    %15 = vsyncpa %s14, 0
    loop: start=0, step=1, limit=4
    $region2: #{tpu_custom_call.1} parent=1 // loop_pre_header
      _
    $region3: #{tpu_custom_call.1} parent=1 // loop_header
      %s17 = sphi 0, %s21
      %p18 = scmp.ge.s32.totalorder %s17, 4
      %s27 = sphi 0, %s29
      %s30 = sphi 0, %s27
      %s31 = sphi 0, %s30
      %s47 = sphi 0, %s31
      %s51 = sphi 0, %s51
      %s53 = sphi 0, %s51
      %s54 = sphi 0, %s53
      %s68 = sphi 0, %s54
      %s72 = sphi 0, %s72
      %s74 = sphi 0, %s72
      %s75 = sphi 0, %s74
      %s89 = sphi 0, %s75
      %s93 = sphi 0, %s93
      %s95 = sphi 0, %s93
      %s96 = sphi 0, %s95
      %s110 = sphi 0, %s96
      %s114 = sphi 0, %s114
      %s116 = sphi 0, %s114
      %s117 = sphi 0, %s116
      %s131 = sphi 0, %s117
      %s137 = sphi 0, %s139
      %s140 = sphi 0, %s137
      %s141 = sphi 0, %s140
      %s157 = sphi 0, %s141
    $region4: #{tpu_custom_call.1} parent=1 // loop_header_branch
      %20 = sbr.rel (%p18) target = $region8
    $region5: #{tpu_custom_call.1} parent=1 // loop_body
      %s22 = ssub.s32 %s17, 1
      %s23 = ssub.s32 %s17, 2
      %s24 = sadd.s32 %s17, 1
      %s25 = ssub.s32 %s17, %s24
      %p26 = scmp.eq.s32.totalorder %s25, 0
      %s28 = sadd.s32 %s27, 1
      %s29 = scalar_select %p26, %s27, %s28
      %p32 = pneg %p26
      %p33 = scmp.eq.s32.totalorder %s17, 1
      %p34 = por %p32, %p33
      %p35 = scmp.ne.s32.totalorder %s27, %s30
      %p36 = scmp.eq.s32.totalorder %s17, 0
      %p37 = por %p35, %p36
      %p38 = scmp.ne.s32.totalorder %s27, %s30
      %p39 = scmp.eq.s32.totalorder %s22, 1
      %p40 = por %p38, %p39
      %p41 = scmp.ne.s32.totalorder %s30, %s31
      %p42 = scmp.eq.s32.totalorder %s22, 0
      %p43 = por %p41, %p42
      %p44 = scmp.ne.s32.totalorder %s30, %s31
      %p45 = scmp.eq.s32.totalorder %s23, 1
      %p46 = por %p44, %p45
      %p48 = scmp.ne.s32.totalorder %s31, %s47
      %p49 = scmp.eq.s32.totalorder %s23, 0
      %p50 = por %p48, %p49
      %s52 = sadd.s32 %s51, 1
      %p55 = scmp.eq.s32.totalorder %s17, 1
      %p56 = scmp.ne.s32.totalorder %s51, %s53
      %p57 = scmp.eq.s32.totalorder %s17, 0
      %p58 = por %p56, %p57
      %p59 = scmp.ne.s32.totalorder %s51, %s53
      %p60 = scmp.eq.s32.totalorder %s22, 1
      %p61 = por %p59, %p60
      %p62 = scmp.ne.s32.totalorder %s53, %s54
      %p63 = scmp.eq.s32.totalorder %s22, 0
      %p64 = por %p62, %p63
      %p65 = scmp.ne.s32.totalorder %s53, %s54
      %p66 = scmp.eq.s32.totalorder %s23, 1
      %p67 = por %p65, %p66
      %p69 = scmp.ne.s32.totalorder %s54, %s68
      %p70 = scmp.eq.s32.totalorder %s23, 0
      %p71 = por %p69, %p70
      %s73 = sadd.s32 %s72, 1
      %p76 = scmp.eq.s32.totalorder %s17, 1
      %p77 = scmp.ne.s32.totalorder %s72, %s74
      %p78 = scmp.eq.s32.totalorder %s17, 0
      %p79 = por %p77, %p78
      %p80 = scmp.ne.s32.totalorder %s72, %s74
      %p81 = scmp.eq.s32.totalorder %s22, 1
      %p82 = por %p80, %p81
      %p83 = scmp.ne.s32.totalorder %s74, %s75
      %p84 = scmp.eq.s32.totalorder %s22, 0
      %p85 = por %p83, %p84
      %p86 = scmp.ne.s32.totalorder %s74, %s75
      %p87 = scmp.eq.s32.totalorder %s23, 1
      %p88 = por %p86, %p87
      %p90 = scmp.ne.s32.totalorder %s75, %s89
      %p91 = scmp.eq.s32.totalorder %s23, 0
      %p92 = por %p90, %p91
      %s94 = sadd.s32 %s93, 1
      %p97 = scmp.eq.s32.totalorder %s17, 1
      %p98 = scmp.ne.s32.totalorder %s93, %s95
      %p99 = scmp.eq.s32.totalorder %s17, 0
      %p100 = por %p98, %p99
      %p101 = scmp.ne.s32.totalorder %s93, %s95
      %p102 = scmp.eq.s32.totalorder %s22, 1
      %p103 = por %p101, %p102
      %p104 = scmp.ne.s32.totalorder %s95, %s96
      %p105 = scmp.eq.s32.totalorder %s22, 0
      %p106 = por %p104, %p105
      %p107 = scmp.ne.s32.totalorder %s95, %s96
      %p108 = scmp.eq.s32.totalorder %s23, 1
      %p109 = por %p107, %p108
      %p111 = scmp.ne.s32.totalorder %s96, %s110
      %p112 = scmp.eq.s32.totalorder %s23, 0
      %p113 = por %p111, %p112
      %s115 = sadd.s32 %s114, 1
      %p118 = scmp.eq.s32.totalorder %s17, 1
      %p119 = scmp.ne.s32.totalorder %s114, %s116
      %p120 = scmp.eq.s32.totalorder %s17, 0
      %p121 = por %p119, %p120
      %p122 = scmp.ne.s32.totalorder %s114, %s116
      %p123 = scmp.eq.s32.totalorder %s22, 1
      %p124 = por %p122, %p123
      %p125 = scmp.ne.s32.totalorder %s116, %s117
      %p126 = scmp.eq.s32.totalorder %s22, 0
      %p127 = por %p125, %p126
      %p128 = scmp.ne.s32.totalorder %s116, %s117
      %p129 = scmp.eq.s32.totalorder %s23, 1
      %p130 = por %p128, %p129
      %p132 = scmp.ne.s32.totalorder %s117, %s131
      %p133 = scmp.eq.s32.totalorder %s23, 0
      %p134 = por %p132, %p133
      %s135 = ssub.s32 %s17, %s24
      %p136 = scmp.eq.s32.totalorder %s135, 0
      %s138 = sadd.s32 %s137, 1
      %s139 = scalar_select %p136, %s137, %s138
      %p142 = pneg %p136
      %p143 = scmp.eq.s32.totalorder %s17, 1
      %p144 = por %p142, %p143
      %p145 = scmp.ne.s32.totalorder %s137, %s140
      %p146 = scmp.eq.s32.totalorder %s17, 0
      %p147 = por %p145, %p146
      %p148 = scmp.ne.s32.totalorder %s137, %s140
      %p149 = scmp.eq.s32.totalorder %s22, 1
      %p150 = por %p148, %p149
      %p151 = scmp.ne.s32.totalorder %s140, %s141
      %p152 = scmp.eq.s32.totalorder %s22, 0
      %p153 = por %p151, %p152
      %p154 = scmp.ne.s32.totalorder %s140, %s141
      %p155 = scmp.eq.s32.totalorder %s23, 1
      %p156 = por %p154, %p155
      %p158 = scmp.ne.s32.totalorder %s141, %s157
      %p159 = scmp.eq.s32.totalorder %s23, 0
      %p160 = por %p158, %p159
      %p161 = scmp.le.s32.totalorder 1, %s17
      %p162 = scmp.lt.s32.totalorder %s17, 3
      %p163 = pnand %p161, %p162
      %p164 = pneg %p163
      // Predicated region
      $region9: #{tpu_custom_call.1} parent=5 // pred_check
        _
      $region10: #{tpu_custom_call.1} parent=5 // pred_check_branch
        %166 = sbr.rel (%p163) target = $region12
      $region11: #{tpu_custom_call.1} parent=5 // pred_region
        %s167 = ssub.s32 %s17, 1
        // Predicated region
        $region13: #{tpu_custom_call.1} parent=11 // pred_check
          %p168 = pneg %p64
        $region14: #{tpu_custom_call.1} parent=11 // pred_check_branch
          %170 = sbr.rel (%p168) target = $region16
        $region15: #{tpu_custom_call.1} parent=11 // pred_region
          _
        $region16: #{tpu_custom_call.1} parent=11 // pred_fallthru
          _
        // Predicated region
        $region17: #{tpu_custom_call.1} parent=11 // pred_check
          %p171 = pneg %p85
        $region18: #{tpu_custom_call.1} parent=11 // pred_check_branch
          %173 = sbr.rel (%p171) target = $region20
        $region19: #{tpu_custom_call.1} parent=11 // pred_region
          _
        $region20: #{tpu_custom_call.1} parent=11 // pred_fallthru
          _
        // Predicated region
        $region21: #{tpu_custom_call.1} parent=11 // pred_check
          %p174 = pneg %p106
        $region22: #{tpu_custom_call.1} parent=11 // pred_check_branch
          %176 = sbr.rel (%p174) target = $region24
        $region23: #{tpu_custom_call.1} parent=11 // pred_region
          _
        $region24: #{tpu_custom_call.1} parent=11 // pred_fallthru
          _
        // Predicated region
        $region25: #{tpu_custom_call.1} parent=11 // pred_check
          %p177 = pneg %p127
        $region26: #{tpu_custom_call.1} parent=11 // pred_check_branch
          %179 = sbr.rel (%p177) target = $region28
        $region27: #{tpu_custom_call.1} parent=11 // pred_region
          _
        $region28: #{tpu_custom_call.1} parent=11 // pred_fallthru
          _
      $region12: #{tpu_custom_call.1} parent=5 // pred_fallthru
        _
      %p180 = scmp.lt.s32.totalorder %s17, 2
      // Predicated region
      $region29: #{tpu_custom_call.1} parent=5 // pred_check
        %p181 = pneg %p180
      $region30: #{tpu_custom_call.1} parent=5 // pred_check_branch
        %183 = sbr.rel (%p181) target = $region32
      $region31: #{tpu_custom_call.1} parent=5 // pred_region
        // Predicated region
        $region33: #{tpu_custom_call.1} parent=31 // pred_check
          %p184 = pneg %p37
        $region34: #{tpu_custom_call.1} parent=31 // pred_check_branch
          %186 = sbr.rel (%p184) target = $region36
        $region35: #{tpu_custom_call.1} parent=31 // pred_region
          %s187 = sand.u32 %s27, 1
          %s188 = scalar_lea.sflag [#allocation4], %s187
          %s189 = sand.u32 %s27, 1
          %s190 = smul.addr %s189, 128
          %s191 = scalar_lea.vmem [#allocation3], %s190
          %s193 = ssub.s32 2048, 2048
          %194 = vsyncadd %s188, %s193
          %s195 = smul.addr %s17, 16
          %s196 = smul.addr %s195, 128
          %s197 = scalar_lea.hbm %s0, %s196
          %s198 = sshll.u32 %s191, 4
          %s199 = int_to_ptr.vmem [resolvable:$true] %s198
          %204 = dma.hbm_to_vmem [thread:$0]  %s197, 2048, %s199, %s188, 256, 256, 16
        $region36: #{tpu_custom_call.1} parent=31 // pred_fallthru
          _
      $region32: #{tpu_custom_call.1} parent=5 // pred_fallthru
        _
      %p205 = scmp.le.s32.totalorder 1, %s17
      %p206 = scmp.lt.s32.totalorder %s17, 3
      %p207 = pnand %p205, %p206
      %p208 = pneg %p207
      // Predicated region
      $region37: #{tpu_custom_call.1} parent=5 // pred_check
        _
      $region38: #{tpu_custom_call.1} parent=5 // pred_check_branch
        %210 = sbr.rel (%p207) target = $region40
      $region39: #{tpu_custom_call.1} parent=5 // pred_region
        %s211 = ssub.s32 %s17, 1
        %s212 = sand.u32 %s30, 1
        %s213 = scalar_lea.sflag [#allocation4], %s212
        %s214 = sand.u32 %s30, 1
        %s215 = smul.addr %s214, 128
        %s216 = scalar_lea.vmem [#allocation3], %s215
        // Predicated region
        $region41: #{tpu_custom_call.1} parent=39 // pred_check
          %p217 = pneg %p43
        $region42: #{tpu_custom_call.1} parent=39 // pred_check_branch
          %219 = sbr.rel (%p217) target = $region44
        $region43: #{tpu_custom_call.1} parent=39 // pred_region
          %220 = dma.done %s213, 2048
        $region44: #{tpu_custom_call.1} parent=39 // pred_fallthru
          _
        %s221 = sand.u32 %s30, 1
        %s222 = scalar_lea.sflag [#allocation4], %s221
        %s223 = sand.u32 %s30, 1
        %s224 = smul.addr %s223, 128
        %s225 = scalar_lea.vmem [#allocation3], %s224
        %p226 = pneg %p43
        %p227 = pneg %p40
        %p228 = pneg %p64
        %p229 = pneg %p61
        %p230 = pneg %p85
        %p231 = pneg %p82
        %p232 = pneg %p106
        %p233 = pneg %p103
        %p234 = pneg %p127
        %p235 = pneg %p124
        %p236 = pneg %p153
        %p237 = pneg %p150
        %s238 = sand.u32 %s140, 1
        %s239 = scalar_lea.sflag [#allocation5], %s238
        %s240 = sand.u32 %s140, 1
        %s241 = smul.addr %s240, 128
        %s242 = scalar_lea.vmem [#allocation6], %s241
        %v243 = vld [vmem:[%s216] sm:$0xff]
        %v244 = vld [vmem:[%s216 + $0x8] sm:$0xff]
        %v245 = vld [vmem:[%s216 + $0x10] sm:$0xff]
        %v246 = vld [vmem:[%s216 + $0x18] sm:$0xff]
        %v247 = vld [vmem:[%s216 + $0x20] sm:$0xff]
        %v248 = vld [vmem:[%s216 + $0x28] sm:$0xff]
        %v249 = vld [vmem:[%s216 + $0x30] sm:$0xff]
        %v250 = vld [vmem:[%s216 + $0x38] sm:$0xff]
        %v251 = vld [vmem:[%s216 + $0x40] sm:$0xff]
        %v252 = vld [vmem:[%s216 + $0x48] sm:$0xff]
        %v253 = vld [vmem:[%s216 + $0x50] sm:$0xff]
        %v254 = vld [vmem:[%s216 + $0x58] sm:$0xff]
        %v255 = vld [vmem:[%s216 + $0x60] sm:$0xff]
        %v256 = vld [vmem:[%s216 + $0x68] sm:$0xff]
        %v257 = vld [vmem:[%s216 + $0x70] sm:$0xff]
        %v258 = vld [vmem:[%s216 + $0x78] sm:$0xff]
        %v259 = vld [vmem:[%s1] sm:$0xff]
        %v260 = vld [vmem:[%s1 + $0x8] sm:$0xff]
        %v261 = vld [vmem:[%s1 + $0x10] sm:$0xff]
        %v262 = vld [vmem:[%s1 + $0x18] sm:$0xff]
        %v263 = vld [vmem:[%s1 + $0x20] sm:$0x3]
        %v264 = vld [vmem:[%s2] sm:$0xff]
        %v265 = vld [vmem:[%s2 + $0x8] sm:$0xff]
        %v266 = vld [vmem:[%s2 + $0x10] sm:$0xff]
        %v267 = vld [vmem:[%s2 + $0x18] sm:$0xff]
        %v268 = vld [vmem:[%s2 + $0x20] sm:$0x3]
        %270 = vset.pattern.permute.xlu0 0
        %271 = vperm.xlu0 %270, %v264
        %v272 = vpop.permute.xlu0 %271
        %275 = vset.pattern.permute.xlu0 0
        %276 = vperm.xlu0 %275, %v265
        %v277 = vpop.permute.xlu0 %276
        %280 = vset.pattern.permute.xlu0 0
        %281 = vperm.xlu0 %280, %v266
        %v282 = vpop.permute.xlu0 %281
        %285 = vset.pattern.permute.xlu0 0
        %286 = vperm.xlu0 %285, %v267
        %v287 = vpop.permute.xlu0 %286
        %290 = vset.pattern.permute.xlu0 0
        %291 = vperm.xlu0 %290, %v268
        %v292 = vpop.permute.xlu0 %291
        %vm294 = vcmask 523264
        %v296 = vsel %vm294, %v259, 0
        %v299 = vsel %vm294, %v260, 0
        %v302 = vsel %vm294, %v261, 0
        %v305 = vsel %vm294, %v262, 0
        %v308 = vsel %vm294, %v263, 0
        %310 = vmatprep.subr.mxu0 0.0
        %311 = vmatpush1.msra.mxu0 0.0
        %312 = vmatprep.subr.mxu0 0.0
        %313 = vmatpush1.msra.mxu0 0.0
        %314 = vmatprep.subr.mxu0 0.0
        %315 = vmatpush1.msra.mxu0 0.0
        %316 = vmatprep.subr.mxu0 0.0
        %317 = vmatpush1.msra.mxu0 0.0
        %318 = vmatprep.subr.mxu0 0.0
        %319 = vmatpush1.msra.mxu0 0.0
        %320 = vmatprep.subr.mxu0 0.0
        %321 = vmatpush1.msra.mxu0 0.0
        %322 = vmatprep.subr.mxu0 0.0
        %323 = vmatpush1.msra.mxu0 0.0
        %324 = vmatprep.subr.mxu0 0.0
        %325 = vmatpush1.msra.mxu0 0.0
        %326 = vmatprep.subr.mxu0 %v258
        %327 = vmatpush1.msra.mxu0 %v257
        %328 = vmatprep.subr.mxu0 %v256
        %329 = vmatpush1.msra.mxu0 %v255
        %330 = vmatprep.subr.mxu0 %v254
        %331 = vmatpush1.msra.mxu0 %v253
        %332 = vmatprep.subr.mxu0 %v252
        %333 = vmatpush1.msra.mxu0 %v251
        %334 = vmatprep.subr.mxu0 %v250
        %335 = vmatpush1.msra.mxu0 %v249
        %336 = vmatprep.subr.mxu0 %v248
        %337 = vmatpush1.msra.mxu0 %v247
        %338 = vmatprep.subr.mxu0 %v246
        %339 = vmatpush1.msra.mxu0 %v245
        %340 = vmatprep.subr.mxu0 %v244
        %341 = vmatpush1.msra.mxu0 %v243
        %342 = vmatprep.subr.mxu0 0.0
        %343 = vmatpush2.msra.mxu0 0.0
        %344 = vmatprep.subr.mxu0 0.0
        %345 = vmatpush2.msra.mxu0 0.0
        %346 = vmatprep.subr.mxu0 0.0
        %347 = vmatpush2.msra.mxu0 0.0
        %348 = vmatprep.subr.mxu0 0.0
        %349 = vmatpush2.msra.mxu0 0.0
        %350 = vmatprep.subr.mxu0 0.0
        %351 = vmatpush2.msra.mxu0 0.0
        %352 = vmatprep.subr.mxu0 0.0
        %353 = vmatpush2.msra.mxu0 0.0
        %354 = vmatprep.subr.mxu0 0.0
        %355 = vmatpush2.msra.mxu0 0.0
        %356 = vmatprep.subr.mxu0 0.0
        %357 = vmatpush2.msra.mxu0 0.0
        %358 = vmatprep.subr.mxu0 0.0
        %359 = vmatpush2.msra.mxu0 0.0
        %360 = vmatprep.subr.mxu0 0.0
        %361 = vmatpush2.msra.mxu0 0.0
        %362 = vmatprep.subr.mxu0 0.0
        %363 = vmatpush2.msra.mxu0 0.0
        %364 = vmatprep.subr.mxu0 0.0
        %365 = vmatpush2.msra.mxu0 0.0
        %366 = vmatprep.subr.mxu0 0.0
        %367 = vmatpush2.msra.mxu0 0.0
        %368 = vmatprep.subr.mxu0 0.0
        %369 = vmatpush2.msra.mxu0 0.0
        %370 = vmatprep.subr.mxu0 0.0
        %371 = vmatpush2.msra.mxu0 0.0
        %372 = vmatprep.subr.mxu0 0.0
        %373 = vmatpush2.msra.mxu0 0.0
        %374 = vmatprep.mubr.f32.mxu0 0.0
        %375 = vmatmul.mubr.f32.gmra.mxu0 %v296
        %v376 = vpop.f32.mrf.mxu0
        %v377 = vadd.f32 %v272, %v376
        %v378 = vpop.f32.mrf.mxu0
        %v379 = vadd.f32 %v272, %v378
        %380 = vmatprep.mubr.f32.mxu0 0.0
        %381 = vmatmul.mubr.f32.gmra.mxu0 %v299
        %v382 = vpop.f32.mrf.mxu0
        %v383 = vadd.f32 %v277, %v382
        %v384 = vpop.f32.mrf.mxu0
        %v385 = vadd.f32 %v277, %v384
        %386 = vmatprep.mubr.f32.mxu0 0.0
        %387 = vmatmul.mubr.f32.gmra.mxu0 %v302
        %v388 = vpop.f32.mrf.mxu0
        %v389 = vadd.f32 %v282, %v388
        %v390 = vpop.f32.mrf.mxu0
        %v391 = vadd.f32 %v282, %v390
        %392 = vmatprep.mubr.f32.mxu0 0.0
        %393 = vmatmul.mubr.f32.gmra.mxu0 %v305
        %v394 = vpop.f32.mrf.mxu0
        %v395 = vadd.f32 %v287, %v394
        %v396 = vpop.f32.mrf.mxu0
        %v397 = vadd.f32 %v287, %v396
        %398 = vmatprep.mubr.f32.mxu0 0.0
        %399 = vmatmul.mubr.f32.gmra.mxu0 %v308
        %v400 = vpop.f32.mrf.mxu0
        %v401 = vadd.f32 %v292, %v400
        %v402 = vpop.f32.mrf.mxu0
        %v403 = vadd.f32 %v292, %v402
        %404 = vdwg.mxu0
        %405 = vst [vmem:[#allocation2] sm:$0xff] %v377
        %406 = vst [vmem:[#allocation2 + $0x8] sm:$0xff] %v379
        %407 = vst [vmem:[#allocation2 + $0x10] sm:$0xff] %v383
        %408 = vst [vmem:[#allocation2 + $0x18] sm:$0xff] %v385
        %409 = vst [vmem:[#allocation2 + $0x20] sm:$0xff] %v389
        %410 = vst [vmem:[#allocation2 + $0x28] sm:$0xff] %v391
        %411 = vst [vmem:[#allocation2 + $0x30] sm:$0xff] %v395
        %412 = vst [vmem:[#allocation2 + $0x38] sm:$0xff] %v397
        %413 = vst [vmem:[#allocation2 + $0x40] sm:$0x3] %v401
        %414 = vst [vmem:[#allocation2 + $0x48] sm:$0x3] %v403
        %v415 = vlaneseq
        %v416 = vand.u32 %v415, 127
        %v417 = vadd.s32 %v416, 128
        %v418 = vand.u32 %v416, 15
        %v419 = vand.u32 %v417, 15
        %v420 = vshra.s32 %v416, 4
        %v421 = vshra.s32 %v417, 4
        %vm422 = vcmp.gt.s32.totalorder %v420, 0
        %vm423 = vcmp.gt.s32.totalorder %v421, 0
        %vm424 = vcmp.lt.s32.totalorder %v420, 15
        %vm425 = vcmp.lt.s32.totalorder %v421, 15
        %vm426 = vcmp.gt.s32.totalorder %v418, 0
        %vm427 = vcmp.gt.s32.totalorder %v419, 0
        %vm428 = vcmp.lt.s32.totalorder %v418, 15
        %vm429 = vcmp.lt.s32.totalorder %v419, 15
        %430 = vrot.lane.b32.xlu0 %v401, 17
        %v431 = vpop.permute.xlu0 %430
        %432 = vrot.lane.b32.xlu0 %v403, 17
        %v433 = vpop.permute.xlu0 %432
        %vm434 = vcmp.lt.s32.totalorder %v416, 17
        %v435 = vsel %vm434, %v431, %v433
        %v436 = vsel %vm434, %v433, %v431
        %vm437 = vmand %vm422, %vm426
        %vm438 = vmand %vm423, %vm427
        %v439 = vsel %vm437, 1, 0
        %v440 = vsel %vm438, 1, 0
        %vm441 = vcmp.eq.s32.totalorder %v439, 1
        %vm442 = vcmp.eq.s32.totalorder %v440, 1
        %v443 = vsel %vm441, %v436, 0.0
        %v444 = vsel %vm442, %v435, 0.0
        %v447 = vrot.slane %v443, 6
        %v448 = vrot.slane %v444, 6
        %451 = vst [vmem:[#allocation2 + $0x40] sm:$0xc] %v447
        %452 = vst [vmem:[#allocation2 + $0x48] sm:$0xc] %v448
        %453 = vrot.lane.b32.xlu0 %v401, 16
        %v454 = vpop.permute.xlu0 %453
        %455 = vrot.lane.b32.xlu0 %v403, 16
        %v456 = vpop.permute.xlu0 %455
        %vm457 = vcmp.lt.s32.totalorder %v416, 16
        %v458 = vsel %vm457, %v454, %v456
        %v459 = vsel %vm457, %v456, %v454
        %v460 = vsel %vm422, 1, 0
        %v461 = vsel %vm423, 1, 0
        %vm462 = vcmp.eq.s32.totalorder %v460, 1
        %vm463 = vcmp.eq.s32.totalorder %v461, 1
        %v464 = vsel %vm462, %v459, 0.0
        %v465 = vsel %vm463, %v458, 0.0
        %v468 = vrot.slane %v464, 4
        %v469 = vrot.slane %v465, 4
        %472 = vst [vmem:[#allocation2 + $0x40] sm:$0x30] %v468
        %473 = vst [vmem:[#allocation2 + $0x48] sm:$0x30] %v469
        %474 = vrot.lane.b32.xlu0 %v401, 15
        %v475 = vpop.permute.xlu0 %474
        %476 = vrot.lane.b32.xlu0 %v403, 15
        %v477 = vpop.permute.xlu0 %476
        %vm478 = vcmp.lt.s32.totalorder %v416, 15
        %v479 = vsel %vm478, %v475, %v477
        %v480 = vsel %vm478, %v477, %v475
        %vm481 = vmand %vm422, %vm428
        %vm482 = vmand %vm423, %vm429
        %v483 = vsel %vm481, 1, 0
        %v484 = vsel %vm482, 1, 0
        %vm485 = vcmp.eq.s32.totalorder %v483, 1
        %vm486 = vcmp.eq.s32.totalorder %v484, 1
        %v487 = vsel %vm485, %v480, 0.0
        %v488 = vsel %vm486, %v479, 0.0
        %v491 = vrot.slane %v487, 2
        %v492 = vrot.slane %v488, 2
        %495 = vst [vmem:[#allocation2 + $0x40] sm:$0xc0] %v491
        %496 = vst [vmem:[#allocation2 + $0x48] sm:$0xc0] %v492
        %497 = vrot.lane.b32.xlu0 %v401, 1
        %v498 = vpop.permute.xlu0 %497
        %499 = vrot.lane.b32.xlu0 %v403, 1
        %v500 = vpop.permute.xlu0 %499
        %vm501 = vcmp.lt.s32.totalorder %v416, 1
        %v502 = vsel %vm501, %v498, %v500
        %v503 = vsel %vm501, %v500, %v498
        %v504 = vsel %vm426, 1, 0
        %v505 = vsel %vm427, 1, 0
        %vm506 = vcmp.eq.s32.totalorder %v504, 1
        %vm507 = vcmp.eq.s32.totalorder %v505, 1
        %v508 = vsel %vm506, %v503, 0.0
        %v509 = vsel %vm507, %v502, 0.0
        %510 = vst [vmem:[#allocation2 + $0x50] sm:$0x3] %v508
        %511 = vst [vmem:[#allocation2 + $0x58] sm:$0x3] %v509
        %512 = vrot.lane.b32.xlu0 %v401, 127
        %v513 = vpop.permute.xlu0 %512
        %514 = vrot.lane.b32.xlu0 %v403, 127
        %v515 = vpop.permute.xlu0 %514
        %vm516 = vcmp.lt.s32.totalorder %v416, 127
        %v517 = vsel %vm516, %v513, %v515
        %v518 = vsel %vm516, %v515, %v513
        %v519 = vsel %vm428, 1, 0
        %v520 = vsel %vm429, 1, 0
        %vm521 = vcmp.eq.s32.totalorder %v519, 1
        %vm522 = vcmp.eq.s32.totalorder %v520, 1
        %v523 = vsel %vm521, %v517, 0.0
        %v524 = vsel %vm522, %v518, 0.0
        %v527 = vrot.slane %v523, 6
        %v528 = vrot.slane %v524, 6
        %531 = vst [vmem:[#allocation2 + $0x50] sm:$0xc] %v527
        %532 = vst [vmem:[#allocation2 + $0x58] sm:$0xc] %v528
        %533 = vrot.lane.b32.xlu0 %v401, 113
        %v534 = vpop.permute.xlu0 %533
        %535 = vrot.lane.b32.xlu0 %v403, 113
        %v536 = vpop.permute.xlu0 %535
        %vm537 = vcmp.lt.s32.totalorder %v416, 113
        %v538 = vsel %vm537, %v534, %v536
        %v539 = vsel %vm537, %v536, %v534
        %vm540 = vmand %vm424, %vm426
        %vm541 = vmand %vm425, %vm427
        %v542 = vsel %vm540, 1, 0
        %v543 = vsel %vm541, 1, 0
        %vm544 = vcmp.eq.s32.totalorder %v542, 1
        %vm545 = vcmp.eq.s32.totalorder %v543, 1
        %v546 = vsel %vm544, %v538, 0.0
        %v547 = vsel %vm545, %v539, 0.0
        %v550 = vrot.slane %v546, 4
        %v551 = vrot.slane %v547, 4
        %554 = vst [vmem:[#allocation2 + $0x50] sm:$0x30] %v550
        %555 = vst [vmem:[#allocation2 + $0x58] sm:$0x30] %v551
        %556 = vrot.lane.b32.xlu0 %v401, 112
        %v557 = vpop.permute.xlu0 %556
        %558 = vrot.lane.b32.xlu0 %v403, 112
        %v559 = vpop.permute.xlu0 %558
        %vm560 = vcmp.lt.s32.totalorder %v416, 112
        %v561 = vsel %vm560, %v557, %v559
        %v562 = vsel %vm560, %v559, %v557
        %v563 = vsel %vm424, 1, 0
        %v564 = vsel %vm425, 1, 0
        %vm565 = vcmp.eq.s32.totalorder %v563, 1
        %vm566 = vcmp.eq.s32.totalorder %v564, 1
        %v567 = vsel %vm565, %v561, 0.0
        %v568 = vsel %vm566, %v562, 0.0
        %v571 = vrot.slane %v567, 2
        %v572 = vrot.slane %v568, 2
        %575 = vst [vmem:[#allocation2 + $0x50] sm:$0xc0] %v571
        %576 = vst [vmem:[#allocation2 + $0x58] sm:$0xc0] %v572
        %577 = vrot.lane.b32.xlu0 %v401, 111
        %v578 = vpop.permute.xlu0 %577
        %579 = vrot.lane.b32.xlu0 %v403, 111
        %v580 = vpop.permute.xlu0 %579
        %vm581 = vcmp.lt.s32.totalorder %v416, 111
        %v582 = vsel %vm581, %v578, %v580
        %v583 = vsel %vm581, %v580, %v578
        %vm584 = vmand %vm424, %vm428
        %vm585 = vmand %vm425, %vm429
        %v586 = vsel %vm584, 1, 0
        %v587 = vsel %vm585, 1, 0
        %vm588 = vcmp.eq.s32.totalorder %v586, 1
        %vm589 = vcmp.eq.s32.totalorder %v587, 1
        %v590 = vsel %vm588, %v582, 0.0
        %v591 = vsel %vm589, %v583, 0.0
        %592 = vst [vmem:[#allocation2 + $0x60] sm:$0x3] %v590
        %593 = vst [vmem:[#allocation2 + $0x68] sm:$0x3] %v591
        %594 = vst [vmem:[#allocation2 + $0x60] sm:$0xfc] 0.0
        %595 = vst [vmem:[#allocation2 + $0x68] sm:$0xfc] 0.0
        %v596 = vld [vmem:[%s3] sm:$0xff]
        %v597 = vld [vmem:[%s3 + $0x8] sm:$0xff]
        %v598 = vld [vmem:[%s3 + $0x10] sm:$0xff]
        %v599 = vld [vmem:[%s3 + $0x18] sm:$0xff]
        %v600 = vld [vmem:[%s3 + $0x20] sm:$0xff]
        %v601 = vld [vmem:[%s3 + $0x28] sm:$0xff]
        %v602 = vld [vmem:[%s3 + $0x30] sm:$0xff]
        %v603 = vld [vmem:[%s3 + $0x38] sm:$0xff]
        %v604 = vld [vmem:[#allocation2] sm:$0xff]
        %v605 = vld [vmem:[#allocation2 + $0x8] sm:$0xff]
        %v606 = vld [vmem:[#allocation2 + $0x10] sm:$0xff]
        %v607 = vld [vmem:[#allocation2 + $0x18] sm:$0xff]
        %v608 = vld [vmem:[#allocation2 + $0x20] sm:$0xff]
        %v609 = vld [vmem:[#allocation2 + $0x28] sm:$0xff]
        %v610 = vld [vmem:[#allocation2 + $0x30] sm:$0xff]
        %v611 = vld [vmem:[#allocation2 + $0x38] sm:$0xff]
        %v612 = vld [vmem:[#allocation2 + $0x40] sm:$0xff]
        %v613 = vld [vmem:[#allocation2 + $0x48] sm:$0xff]
        %v614 = vld [vmem:[#allocation2 + $0x50] sm:$0xff]
        %v615 = vld [vmem:[#allocation2 + $0x58] sm:$0xff]
        %v616 = vld [vmem:[#allocation2 + $0x60] sm:$0xff]
        %v617 = vld [vmem:[#allocation2 + $0x68] sm:$0xff]
        %v618 = vld [vmem:[%s4] sm:$0xff]
        %v619 = vld [vmem:[%s4 + $0x8] sm:$0xff]
        %v620 = vld [vmem:[%s4 + $0x10] sm:$0xff]
        %v621 = vld [vmem:[%s4 + $0x18] sm:$0xff]
        %v622 = vld [vmem:[%s4 + $0x20] sm:$0xff]
        %v623 = vld [vmem:[%s4 + $0x28] sm:$0xff]
        %v624 = vld [vmem:[%s4 + $0x30] sm:$0xff]
        %v625 = vld [vmem:[%s4 + $0x38] sm:$0xff]
        %627 = vset.pattern.permute.xlu0 0
        %628 = vperm.xlu0 %627, %v618
        %v629 = vpop.permute.xlu0 %628
        %632 = vset.pattern.permute.xlu0 0
        %633 = vperm.xlu0 %632, %v619
        %v634 = vpop.permute.xlu0 %633
        %637 = vset.pattern.permute.xlu0 0
        %638 = vperm.xlu0 %637, %v620
        %v639 = vpop.permute.xlu0 %638
        %642 = vset.pattern.permute.xlu0 0
        %643 = vperm.xlu0 %642, %v621
        %v644 = vpop.permute.xlu0 %643
        %647 = vset.pattern.permute.xlu0 0
        %648 = vperm.xlu0 %647, %v622
        %v649 = vpop.permute.xlu0 %648
        %652 = vset.pattern.permute.xlu0 0
        %653 = vperm.xlu0 %652, %v623
        %v654 = vpop.permute.xlu0 %653
        %657 = vset.pattern.permute.xlu0 0
        %658 = vperm.xlu0 %657, %v624
        %v659 = vpop.permute.xlu0 %658
        %662 = vset.pattern.permute.xlu0 0
        %663 = vperm.xlu0 %662, %v625
        %v664 = vpop.permute.xlu0 %663
        %vm666 = vcmask 457728
        %v668 = vsel %vm666, %v596, 0
        %v671 = vsel %vm666, %v597, 0
        %v674 = vsel %vm666, %v598, 0
        %v677 = vsel %vm666, %v599, 0
        %v680 = vsel %vm666, %v600, 0
        %v683 = vsel %vm666, %v601, 0
        %v686 = vsel %vm666, %v602, 0
        %v689 = vsel %vm666, %v603, 0
        %691 = vmatprep.subr.mxu0 0.0
        %692 = vmatpush1.msra.mxu0 0.0
        %693 = vmatprep.subr.mxu0 0.0
        %694 = vmatpush1.msra.mxu0 0.0
        %695 = vmatprep.subr.mxu0 0.0
        %696 = vmatpush1.msra.mxu0 0.0
        %697 = vmatprep.subr.mxu0 0.0
        %698 = vmatpush1.msra.mxu0 0.0
        %699 = vmatprep.subr.mxu0 0.0
        %700 = vmatpush1.msra.mxu0 0.0
        %701 = vmatprep.subr.mxu0 0.0
        %702 = vmatpush1.msra.mxu0 0.0
        %703 = vmatprep.subr.mxu0 0.0
        %704 = vmatpush1.msra.mxu0 0.0
        %705 = vmatprep.subr.mxu0 0.0
        %706 = vmatpush1.msra.mxu0 0.0
        %707 = vmatprep.subr.mxu0 0.0
        %708 = vmatpush1.msra.mxu0 0.0
        %709 = vmatprep.subr.mxu0 %v617
        %710 = vmatpush1.msra.mxu0 %v616
        %711 = vmatprep.subr.mxu0 %v615
        %712 = vmatpush1.msra.mxu0 %v614
        %713 = vmatprep.subr.mxu0 %v613
        %714 = vmatpush1.msra.mxu0 %v612
        %715 = vmatprep.subr.mxu0 %v611
        %716 = vmatpush1.msra.mxu0 %v610
        %717 = vmatprep.subr.mxu0 %v609
        %718 = vmatpush1.msra.mxu0 %v608
        %719 = vmatprep.subr.mxu0 %v607
        %720 = vmatpush1.msra.mxu0 %v606
        %721 = vmatprep.subr.mxu0 %v605
        %722 = vmatpush1.msra.mxu0 %v604
        %723 = vmatprep.subr.mxu0 0.0
        %724 = vmatpush2.msra.mxu0 0.0
        %725 = vmatprep.subr.mxu0 0.0
        %726 = vmatpush2.msra.mxu0 0.0
        %727 = vmatprep.subr.mxu0 0.0
        %728 = vmatpush2.msra.mxu0 0.0
        %729 = vmatprep.subr.mxu0 0.0
        %730 = vmatpush2.msra.mxu0 0.0
        %731 = vmatprep.subr.mxu0 0.0
        %732 = vmatpush2.msra.mxu0 0.0
        %733 = vmatprep.subr.mxu0 0.0
        %734 = vmatpush2.msra.mxu0 0.0
        %735 = vmatprep.subr.mxu0 0.0
        %736 = vmatpush2.msra.mxu0 0.0
        %737 = vmatprep.subr.mxu0 0.0
        %738 = vmatpush2.msra.mxu0 0.0
        %739 = vmatprep.subr.mxu0 0.0
        %740 = vmatpush2.msra.mxu0 0.0
        %741 = vmatprep.subr.mxu0 0.0
        %742 = vmatpush2.msra.mxu0 0.0
        %743 = vmatprep.subr.mxu0 0.0
        %744 = vmatpush2.msra.mxu0 0.0
        %745 = vmatprep.subr.mxu0 0.0
        %746 = vmatpush2.msra.mxu0 0.0
        %747 = vmatprep.subr.mxu0 0.0
        %748 = vmatpush2.msra.mxu0 0.0
        %749 = vmatprep.subr.mxu0 0.0
        %750 = vmatpush2.msra.mxu0 0.0
        %751 = vmatprep.subr.mxu0 0.0
        %752 = vmatpush2.msra.mxu0 0.0
        %753 = vmatprep.subr.mxu0 0.0
        %754 = vmatpush2.msra.mxu0 0.0
        %755 = vmatprep.mubr.f32.mxu0 0.0
        %756 = vmatmul.mubr.f32.gmra.mxu0 %v668
        %v757 = vpop.f32.mrf.mxu0
        %v758 = vadd.f32 %v629, %v757
        %v759 = vpop.f32.mrf.mxu0
        %v760 = vadd.f32 %v629, %v759
        %761 = vmatprep.mubr.f32.mxu0 0.0
        %762 = vmatmul.mubr.f32.gmra.mxu0 %v671
        %v763 = vpop.f32.mrf.mxu0
        %v764 = vadd.f32 %v634, %v763
        %v765 = vpop.f32.mrf.mxu0
        %v766 = vadd.f32 %v634, %v765
        %767 = vmatprep.mubr.f32.mxu0 0.0
        %768 = vmatmul.mubr.f32.gmra.mxu0 %v674
        %v769 = vpop.f32.mrf.mxu0
        %v770 = vadd.f32 %v639, %v769
        %v771 = vpop.f32.mrf.mxu0
        %v772 = vadd.f32 %v639, %v771
        %773 = vmatprep.mubr.f32.mxu0 0.0
        %774 = vmatmul.mubr.f32.gmra.mxu0 %v677
        %v775 = vpop.f32.mrf.mxu0
        %v776 = vadd.f32 %v644, %v775
        %v777 = vpop.f32.mrf.mxu0
        %v778 = vadd.f32 %v644, %v777
        %779 = vmatprep.mubr.f32.mxu0 0.0
        %780 = vmatmul.mubr.f32.gmra.mxu0 %v680
        %v781 = vpop.f32.mrf.mxu0
        %v782 = vadd.f32 %v649, %v781
        %v783 = vpop.f32.mrf.mxu0
        %v784 = vadd.f32 %v649, %v783
        %785 = vmatprep.mubr.f32.mxu0 0.0
        %786 = vmatmul.mubr.f32.gmra.mxu0 %v683
        %v787 = vpop.f32.mrf.mxu0
        %v788 = vadd.f32 %v654, %v787
        %v789 = vpop.f32.mrf.mxu0
        %v790 = vadd.f32 %v654, %v789
        %791 = vmatprep.mubr.f32.mxu0 0.0
        %792 = vmatmul.mubr.f32.gmra.mxu0 %v686
        %v793 = vpop.f32.mrf.mxu0
        %v794 = vadd.f32 %v659, %v793
        %v795 = vpop.f32.mrf.mxu0
        %v796 = vadd.f32 %v659, %v795
        %797 = vmatprep.mubr.f32.mxu0 0.0
        %798 = vmatmul.mubr.f32.gmra.mxu0 %v689
        %v799 = vpop.f32.mrf.mxu0
        %v800 = vadd.f32 %v664, %v799
        %v801 = vpop.f32.mrf.mxu0
        %v802 = vadd.f32 %v664, %v801
        %803 = vdwg.mxu0
        %v804 = vxor.u32 %v758, 2147483648
        %v805 = vxor.u32 %v760, 2147483648
        %v806 = vxor.u32 %v764, 2147483648
        %v807 = vxor.u32 %v766, 2147483648
        %v808 = vxor.u32 %v770, 2147483648
        %v809 = vxor.u32 %v772, 2147483648
        %v810 = vxor.u32 %v776, 2147483648
        %v811 = vxor.u32 %v778, 2147483648
        %v812 = vxor.u32 %v782, 2147483648
        %v813 = vxor.u32 %v784, 2147483648
        %v814 = vxor.u32 %v788, 2147483648
        %v815 = vxor.u32 %v790, 2147483648
        %v816 = vxor.u32 %v794, 2147483648
        %v817 = vxor.u32 %v796, 2147483648
        %v818 = vxor.u32 %v800, 2147483648
        %v819 = vxor.u32 %v802, 2147483648
        %v820 = vmul.f32 %v804, 1.442695
        %v821 = vpow.pop %v820
        %v822 = vmul.f32 %v805, 1.442695
        %v823 = vpow.pop %v822
        %v824 = vmul.f32 %v806, 1.442695
        %v825 = vpow.pop %v824
        %v826 = vmul.f32 %v807, 1.442695
        %v827 = vpow.pop %v826
        %v828 = vmul.f32 %v808, 1.442695
        %v829 = vpow.pop %v828
        %v830 = vmul.f32 %v809, 1.442695
        %v831 = vpow.pop %v830
        %v832 = vmul.f32 %v810, 1.442695
        %v833 = vpow.pop %v832
        %v834 = vmul.f32 %v811, 1.442695
        %v835 = vpow.pop %v834
        %v836 = vmul.f32 %v812, 1.442695
        %v837 = vpow.pop %v836
        %v838 = vmul.f32 %v813, 1.442695
        %v839 = vpow.pop %v838
        %v840 = vmul.f32 %v814, 1.442695
        %v841 = vpow.pop %v840
        %v842 = vmul.f32 %v815, 1.442695
        %v843 = vpow.pop %v842
        %v844 = vmul.f32 %v816, 1.442695
        %v845 = vpow.pop %v844
        %v846 = vmul.f32 %v817, 1.442695
        %v847 = vpow.pop %v846
        %v848 = vmul.f32 %v818, 1.442695
        %v849 = vpow.pop %v848
        %v850 = vmul.f32 %v819, 1.442695
        %v851 = vpow.pop %v850
        %v852 = vadd.f32 %v821, 1.0
        %v853 = vadd.f32 %v823, 1.0
        %v854 = vadd.f32 %v825, 1.0
        %v855 = vadd.f32 %v827, 1.0
        %v856 = vadd.f32 %v829, 1.0
        %v857 = vadd.f32 %v831, 1.0
        %v858 = vadd.f32 %v833, 1.0
        %v859 = vadd.f32 %v835, 1.0
        %v860 = vadd.f32 %v837, 1.0
        %v861 = vadd.f32 %v839, 1.0
        %v862 = vadd.f32 %v841, 1.0
        %v863 = vadd.f32 %v843, 1.0
        %v864 = vadd.f32 %v845, 1.0
        %v865 = vadd.f32 %v847, 1.0
        %v866 = vadd.f32 %v849, 1.0
        %v867 = vadd.f32 %v851, 1.0
        %v868 = vrcp.pop %v852
        %v869 = vmul.f32 1.0, %v868
        %v870 = vrcp.pop %v853
        %v871 = vmul.f32 1.0, %v870
        %v872 = vrcp.pop %v854
        %v873 = vmul.f32 1.0, %v872
        %v874 = vrcp.pop %v855
        %v875 = vmul.f32 1.0, %v874
        %v876 = vrcp.pop %v856
        %v877 = vmul.f32 1.0, %v876
        %v878 = vrcp.pop %v857
        %v879 = vmul.f32 1.0, %v878
        %v880 = vrcp.pop %v858
        %v881 = vmul.f32 1.0, %v880
        %v882 = vrcp.pop %v859
        %v883 = vmul.f32 1.0, %v882
        %v884 = vrcp.pop %v860
        %v885 = vmul.f32 1.0, %v884
        %v886 = vrcp.pop %v861
        %v887 = vmul.f32 1.0, %v886
        %v888 = vrcp.pop %v862
        %v889 = vmul.f32 1.0, %v888
        %v890 = vrcp.pop %v863
        %v891 = vmul.f32 1.0, %v890
        %v892 = vrcp.pop %v864
        %v893 = vmul.f32 1.0, %v892
        %v894 = vrcp.pop %v865
        %v895 = vmul.f32 1.0, %v894
        %v896 = vrcp.pop %v866
        %v897 = vmul.f32 1.0, %v896
        %v898 = vrcp.pop %v867
        %v899 = vmul.f32 1.0, %v898
        %v900 = vmul.f32 %v758, %v869
        %v901 = vmul.f32 %v760, %v871
        %v902 = vmul.f32 %v764, %v873
        %v903 = vmul.f32 %v766, %v875
        %v904 = vmul.f32 %v770, %v877
        %v905 = vmul.f32 %v772, %v879
        %v906 = vmul.f32 %v776, %v881
        %v907 = vmul.f32 %v778, %v883
        %v908 = vmul.f32 %v782, %v885
        %v909 = vmul.f32 %v784, %v887
        %v910 = vmul.f32 %v788, %v889
        %v911 = vmul.f32 %v790, %v891
        %v912 = vmul.f32 %v794, %v893
        %v913 = vmul.f32 %v796, %v895
        %v914 = vmul.f32 %v800, %v897
        %v915 = vmul.f32 %v802, %v899
        %916 = vst [vmem:[%s242] sm:$0xff] %v900
        %917 = vst [vmem:[%s242 + $0x8] sm:$0xff] %v901
        %918 = vst [vmem:[%s242 + $0x10] sm:$0xff] %v902
        %919 = vst [vmem:[%s242 + $0x18] sm:$0xff] %v903
        %920 = vst [vmem:[%s242 + $0x20] sm:$0xff] %v904
        %921 = vst [vmem:[%s242 + $0x28] sm:$0xff] %v905
        %922 = vst [vmem:[%s242 + $0x30] sm:$0xff] %v906
        %923 = vst [vmem:[%s242 + $0x38] sm:$0xff] %v907
        %924 = vst [vmem:[%s242 + $0x40] sm:$0xff] %v908
        %925 = vst [vmem:[%s242 + $0x48] sm:$0xff] %v909
        %926 = vst [vmem:[%s242 + $0x50] sm:$0xff] %v910
        %927 = vst [vmem:[%s242 + $0x58] sm:$0xff] %v911
        %928 = vst [vmem:[%s242 + $0x60] sm:$0xff] %v912
        %929 = vst [vmem:[%s242 + $0x68] sm:$0xff] %v913
        %930 = vst [vmem:[%s242 + $0x70] sm:$0xff] %v914
        %931 = vst [vmem:[%s242 + $0x78] sm:$0xff] %v915
        %s932 = sand.u32 %s140, 1
        %s933 = scalar_lea.sflag [#allocation5], %s932
        %s934 = sand.u32 %s140, 1
        %s935 = smul.addr %s934, 128
        %s936 = scalar_lea.vmem [#allocation6], %s935
        // Predicated region
        $region45: #{tpu_custom_call.1} parent=39 // pred_check
          %p937 = pneg %p150
        $region46: #{tpu_custom_call.1} parent=39 // pred_check_branch
          %939 = sbr.rel (%p937) target = $region48
        $region47: #{tpu_custom_call.1} parent=39 // pred_region
          %s941 = ssub.s32 2048, 2048
          %942 = vsyncadd %s933, %s941
          %s943 = smul.addr %s22, 16
          %s944 = smul.addr %s943, 128
          %s945 = scalar_lea.hbm %s5, %s944
          %s946 = sshll.u32 %s936, 4
          %s947 = int_to_ptr.vmem [resolvable:$true] %s946
          %952 = dma.vmem_to_hbm [thread:$0]  %s947, 2048, %s945, %s933, 256, 256, 16
        $region48: #{tpu_custom_call.1} parent=39 // pred_fallthru
          _
      $region40: #{tpu_custom_call.1} parent=5 // pred_fallthru
        _
      %p953 = scmp.le.s32.totalorder 2, %s17
      // Predicated region
      $region49: #{tpu_custom_call.1} parent=5 // pred_check
        %p954 = pneg %p953
      $region50: #{tpu_custom_call.1} parent=5 // pred_check_branch
        %956 = sbr.rel (%p954) target = $region52
      $region51: #{tpu_custom_call.1} parent=5 // pred_region
        %s957 = ssub.s32 %s17, 2
        // Predicated region
        $region53: #{tpu_custom_call.1} parent=51 // pred_check
          %p958 = pneg %p156
        $region54: #{tpu_custom_call.1} parent=51 // pred_check_branch
          %960 = sbr.rel (%p958) target = $region56
        $region55: #{tpu_custom_call.1} parent=51 // pred_region
          %s961 = sand.u32 %s141, 1
          %s962 = scalar_lea.sflag [#allocation5], %s961
          %s963 = sand.u32 %s141, 1
          %s964 = smul.addr %s963, 128
          %s965 = scalar_lea.vmem [#allocation6], %s964
          %966 = dma.done %s962, 2048
        $region56: #{tpu_custom_call.1} parent=51 // pred_fallthru
          _
      $region52: #{tpu_custom_call.1} parent=5 // pred_fallthru
        _
    $region6: #{tpu_custom_call.1} parent=1 // loop_footer
      %s21 = sadd.s32 1, %s17
    $region7: #{tpu_custom_call.1} parent=1 // loop_footer_branch
      %16 = sbr.rel target = $region3
    $region8: #{tpu_custom_call.1} parent=1 // loop_exit
      _
    %967 = vsyncpa [#allocation4], 1
    %s968 = scalar_lea.sflag [#allocation4], 1
    %969 = vsyncpa %s968, 1
    %970 = vsyncpa [#allocation5], 1
    %s971 = scalar_lea.sflag [#allocation5], 1
    %972 = vsyncpa %s971, 1

</llo_original>
